<compile_context>
chip_gen: v7x
topology: tpu7x:2x2x1
jax: 0.10.0
libtpu: 0.0.40
codegen_flags: <defaults>
</compile_context>

<pallas_src>
import functools

import jax
import jax.numpy as jnp
from jax.experimental import pallas as pl
from jax.experimental.pallas import tpu as pltpu

EPS = 1e-5
_LANE = 128
_VMEM_BUDGET = 12 << 20  # conservative double-buffered working-set budget (bytes)


def _round_up(x, m):
    return (x + m - 1) // m * m


def _choose_tiles(B, C_in, C_out, T_pad, x_bytes, out_bytes, budget=_VMEM_BUDGET):
    """Largest (Bb, tT) whose double-buffered pass-2 working set fits `budget`."""
    w_bytes = 2 * C_out * C_in * x_bytes  # resident weight, worst-case double-buffered
    tt_cands = [t for t in range(_LANE, T_pad + 1, _LANE) if T_pad % t == 0]
    bb_cands = [b for b in range(1, B + 1) if B % b == 0]
    best_bb, best_tt = 1, _LANE
    for tt in tt_cands:
        for bb in bb_cands:
            work = 2 * bb * tt * (C_in * x_bytes + C_out * out_bytes) + w_bytes
            if work <= budget and bb * tt > best_bb * best_tt:
                best_bb, best_tt = bb, tt
    return best_bb, best_tt


def _stats_kernel(x_ref, w_ref, sum_ref, sq_ref):
    # x_ref: (Bb, C_in, tT) bf16;  w_ref: (C_out, C_in) bf16
    # sum_ref / sq_ref: (1, C_out, 128) f32 lane-resident accumulators, one block per
    # batch-block, resident across the ("arbitrary") time axis.
    @pl.when(pl.program_id(1) == 0)
    def _():
        sum_ref[...] = jnp.zeros_like(sum_ref)
        sq_ref[...] = jnp.zeros_like(sq_ref)

    w = w_ref[...]
    Bb, _, tT = x_ref.shape
    s = jnp.zeros(sum_ref.shape[1:], jnp.float32)  # (C_out, 128)
    q = jnp.zeros(sq_ref.shape[1:], jnp.float32)
    for bb in range(Bb):  # static unroll over the small batch block
        y = jnp.dot(w, x_ref[bb], preferred_element_type=jnp.float32)  # (C_out, tT) f32
        for g in range(tT // _LANE):  # lane-tile-aligned static slices, VPU adds only
            c = y[:, g * _LANE:(g + 1) * _LANE]
            s = s + c
            q = q + c * c
    sum_ref[0] += s
    sq_ref[0] += q


def _normalize_kernel(x_ref, w_ref, scale_ref, shift_ref, o_ref):
    # Recompute y per tile, fused BN scale/shift + ReLU, lane-dense NCW store.
    w = w_ref[...]
    scale = scale_ref[...]  # (C_out, 1) f32, broadcasts over the lane (T) axis
    shift = shift_ref[...]
    for bb in range(x_ref.shape[0]):
        y = jnp.dot(w, x_ref[bb], preferred_element_type=jnp.float32)  # (C_out, tT)
        o_ref[bb] = jnp.maximum(y * scale + shift, 0.0).astype(o_ref.dtype)


@functools.partial(jax.jit, static_argnames=("out_dtype",))
def dense_layer(x, weight, gamma, beta, out_dtype=jnp.float32):
    """DenseLayer forward: 1x1 Conv1d (no bias) -> BatchNorm1d (train stats) -> ReLU.

    x:      (B, C_in, T) or (B, C_in)        (PyTorch NCW layout, kept as-is)
    weight: (C_out, C_in) or (C_out, C_in, 1) (Conv1d kernel-size-1 weight)
    gamma, beta: (C_out,)                    BatchNorm1d affine params
    """
    squeeze_back = x.ndim == 2
    if squeeze_back:
        x = x[..., None]

    B, C_in, T = x.shape
    C_out = weight.shape[0]

    # bf16 data movement, f32 accumulation on the MXU (precision change vs f32 torch).
    xk = x.astype(jnp.bfloat16)
    wk = weight.reshape(C_out, C_in).astype(jnp.bfloat16)

    T_pad = _round_up(T, _LANE)
    if T_pad != T:
        # Zero pad: padded columns give y == 0, contributing exactly 0 to sum/sumsq.
        xk = jnp.pad(xk, ((0, 0), (0, 0), (0, T_pad - T)))

    x_bytes = jnp.dtype(jnp.bfloat16).itemsize
    o_bytes = jnp.dtype(out_dtype).itemsize
    Bb, tT = _choose_tiles(B, C_in, C_out, T_pad, x_bytes, o_bytes)
    nB, nT = B // Bb, T_pad // tT
    grid = (nB, nT)

    x_spec = pl.BlockSpec((Bb, C_in, tT), lambda b, t: (b, 0, t))
    w_spec = pl.BlockSpec((C_out, C_in), lambda b, t: (0, 0))

    # ---- pass 1: per-batch-block lane-resident partial sum / sum-of-squares of y = w @ x
    acc_spec = pl.BlockSpec((1, C_out, _LANE), lambda b, t: (b, 0, 0))
    psum, psq = pl.pallas_call(
        _stats_kernel,
        out_shape=(jax.ShapeDtypeStruct((nB, C_out, _LANE), jnp.float32),
                   jax.ShapeDtypeStruct((nB, C_out, _LANE), jnp.float32)),
        grid=grid,
        in_specs=[x_spec, w_spec],
        out_specs=(acc_spec, acc_spec),
        compiler_params=pltpu.CompilerParams(
            dimension_semantics=("parallel", "arbitrary")),
    )(xk, wk)

    # ---- fold BN into one per-channel scale/shift (tiny O(C_out) math)
    n = B * T  # true (unpadded) sample count per channel
    sum_y = jnp.sum(psum, axis=(0, 2))
    sq_y = jnp.sum(psq, axis=(0, 2))
    mean = sum_y / n
    # TODO(synk): E[y^2]-E[y]^2 in f32 can cancel for very large N / large channel means;
    # a centered second sweep would be more robust but costs an extra pass over x.
    var = jnp.maximum(sq_y / n - mean * mean, 0.0)  # biased (training-mode) variance
    scale = (gamma.astype(jnp.float32) * jax.lax.rsqrt(var + EPS)).reshape(C_out, 1)
    shift = beta.astype(jnp.float32).reshape(C_out, 1) - mean.reshape(C_out, 1) * scale

    vec_spec = pl.BlockSpec((C_out, 1), lambda b, t: (0, 0))

    # ---- pass 2: recompute y per tile, fused scale/shift + ReLU, lane-dense NCW output
    out = pl.pallas_call(
        _normalize_kernel,
        out_shape=jax.ShapeDtypeStruct((B, C_out, T_pad), out_dtype),
        grid=grid,
        in_specs=[x_spec, w_spec, vec_spec, vec_spec],
        out_specs=pl.BlockSpec((Bb, C_out, tT), lambda b, t: (b, 0, t)),
        compiler_params=pltpu.CompilerParams(
            dimension_semantics=("parallel", "parallel")),
    )(xk, wk, scale, shift)

    if T_pad != T:
        out = out[:, :, :T]
    if squeeze_back:
        out = out[..., 0]
    return out


def _reference(x, weight, gamma, beta):
    # pure-JAX reference of the same forward (training-mode BN batch statistics)
    y = jnp.einsum('bit,oi->bot', x, weight, precision='highest')
    mean = jnp.mean(y, axis=(0, 2), keepdims=True)
    var = jnp.mean((y - mean) ** 2, axis=(0, 2), keepdims=True)
    y = (y - mean) * jax.lax.rsqrt(var + EPS)
    y = y * gamma[None, :, None] + beta[None, :, None]
    return jnp.maximum(y, 0.0)


if __name__ == "__main__":
    key = jax.random.PRNGKey(0)
    k_x, k_w, k_g, k_b = jax.random.split(key, 4)

    # small shapes; T deliberately not a multiple of 128 to exercise the padding path
    B, C_in, C_out, T = 2, 32, 64, 200

    x = jax.random.normal(k_x, (B, C_in, T), dtype=jnp.float32)
    weight = jax.random.normal(k_w, (C_out, C_in), dtype=jnp.float32) * (1.0 / jnp.sqrt(C_in))
    gamma = 1.0 + 0.1 * jax.random.normal(k_g, (C_out,), dtype=jnp.float32)
    beta = 0.1 * jax.random.normal(k_b, (C_out,), dtype=jnp.float32)

    out = jax.block_until_ready(dense_layer(x, weight, gamma, beta))
    assert out.shape == (B, C_out, T)

    # Reference evaluated on the same bf16-quantized inputs the kernel moves through HBM
    # (kernel accumulates in f32 on the MXU), so only accumulation-order noise remains.
    xq = x.astype(jnp.bfloat16).astype(jnp.float32)
    wq = weight.astype(jnp.bfloat16).astype(jnp.float32)
    ref = _reference(xq, wq, gamma, beta)
    assert jnp.allclose(out, ref, atol=2e-3, rtol=2e-3), float(jnp.max(jnp.abs(out - ref)))

    # TODO(synk): BatchNorm running_mean/running_var updates (PyTorch training-mode side
    # effect) are not produced here; forward output only.
    print("KERNEL_OK")
</pallas_src>

<mosaic_0001>
module attributes {stable_mosaic.version = 11 : i64} {
  func.func @_stats_kernel(%arg0: i32, %arg1: i32, %arg2: memref<2x32x256xbf16, #tpu.memory_space<vmem>>, %arg3: memref<64x32xbf16, #tpu.memory_space<vmem>>, %arg4: memref<1x64x128xf32, #tpu.memory_space<vmem>>, %arg5: memref<1x64x128xf32, #tpu.memory_space<vmem>>) attributes {dimension_semantics = [#tpu.dimension_semantics<parallel>, #tpu.dimension_semantics<arbitrary>], iteration_bounds = array<i64: 1, 1>, scalar_prefetch = 0 : i64, scratch_operands = 0 : i64, tpu.core_type = #tpu.core_type<tc>, window_params = [{transform_indices = @transform_0, window_bounds = array<i64: 2, 32, 256>}, {pipeline_mode = #tpu.pipeline_mode<synchronous>, transform_indices = @transform_1, window_bounds = array<i64: 64, 32>}, {transform_indices = @transform_2, window_bounds = array<i64: 1, 64, 128>}, {transform_indices = @transform_3, window_bounds = array<i64: 1, 64, 128>}]} {
    %c0_i32 = arith.constant 0 : i32
    %0 = arith.cmpi eq, %arg1, %c0_i32 : i32
    %1 = arith.extui %0 : i1 to i32
    %c0_i32_0 = arith.constant 0 : i32
    %2 = arith.cmpi ne, %1, %c0_i32_0 : i32
    scf.if %2 {
      %cst_22 = arith.constant 0.000000e+00 : f32
      %40 = vector.broadcast %cst_22 : f32 to vector<1x64x128xf32>
      %c0_23 = arith.constant 0 : index
      %c0_24 = arith.constant 0 : index
      %c0_25 = arith.constant 0 : index
      %41 = vector.load %arg4[%c0_23, %c0_24, %c0_25] : memref<1x64x128xf32, #tpu.memory_space<vmem>>, vector<1x64x128xf32>
      tpu.vector_store %arg4[%c0_23, %c0_24, %c0_25], %40 {strides = array<i32>} : memref<1x64x128xf32, #tpu.memory_space<vmem>>, vector<1x64x128xf32>,
      %cst_26 = arith.constant 0.000000e+00 : f32
      %42 = vector.broadcast %cst_26 : f32 to vector<1x64x128xf32>
      %c0_27 = arith.constant 0 : index
      %c0_28 = arith.constant 0 : index
      %c0_29 = arith.constant 0 : index
      %43 = vector.load %arg5[%c0_27, %c0_28, %c0_29] : memref<1x64x128xf32, #tpu.memory_space<vmem>>, vector<1x64x128xf32>
      tpu.vector_store %arg5[%c0_27, %c0_28, %c0_29], %42 {strides = array<i32>} : memref<1x64x128xf32, #tpu.memory_space<vmem>>, vector<1x64x128xf32>,
    } else {
    }
    %c0 = arith.constant 0 : index
    %c0_1 = arith.constant 0 : index
    %3 = vector.load %arg3[%c0, %c0_1] : memref<64x32xbf16, #tpu.memory_space<vmem>>, vector<64x32xbf16>
    %cst = arith.constant 0.000000e+00 : f32
    %4 = vector.broadcast %cst : f32 to vector<64x128xf32>
    %cst_2 = arith.constant 0.000000e+00 : f32
    %5 = vector.broadcast %cst_2 : f32 to vector<64x128xf32>
    %c0_3 = arith.constant 0 : index
    %c0_4 = arith.constant 0 : index
    %c0_5 = arith.constant 0 : index
    %6 = vector.load %arg2[%c0_3, %c0_4, %c0_5] : memref<2x32x256xbf16, #tpu.memory_space<vmem>>, vector<1x32x256xbf16>
    %7 = vector.shape_cast %6 : vector<1x32x256xbf16> to vector<32x256xbf16>
    %cst_6 = arith.constant dense<0.000000e+00> : vector<64x256xf32>
    %8 = tpu.matmul %3, %7, %cst_6 {dimension_numbers = #tpu.dot_dimension_numbers<[1], [0], [0], [1], [0, 0, 1, 1], [], []>} : vector<64x32xbf16>, vector<32x256xbf16>, vector<64x256xf32> -> vector<64x256xf32>
    %9 = vector.extract_strided_slice %8 {offsets = [0, 0], sizes = [64, 128], strides = [1, 1]} : vector<64x256xf32> to vector<64x128xf32>
    %10 = arith.addf %4, %9 : vector<64x128xf32>
    %11 = arith.mulf %9, %9 : vector<64x128xf32>
    %12 = arith.addf %5, %11 : vector<64x128xf32>
    %13 = vector.extract_strided_slice %8 {offsets = [0, 128], sizes = [64, 128], strides = [1, 1]} : vector<64x256xf32> to vector<64x128xf32>
    %14 = arith.addf %10, %13 : vector<64x128xf32>
    %15 = arith.mulf %13, %13 : vector<64x128xf32>
    %16 = arith.addf %12, %15 : vector<64x128xf32>
    %c1 = arith.constant 1 : index
    %c0_7 = arith.constant 0 : index
    %c0_8 = arith.constant 0 : index
    %17 = vector.load %arg2[%c1, %c0_7, %c0_8] : memref<2x32x256xbf16, #tpu.memory_space<vmem>>, vector<1x32x256xbf16>
    %18 = vector.shape_cast %17 : vector<1x32x256xbf16> to vector<32x256xbf16>
    %cst_9 = arith.constant dense<0.000000e+00> : vector<64x256xf32>
    %19 = tpu.matmul %3, %18, %cst_9 {dimension_numbers = #tpu.dot_dimension_numbers<[1], [0], [0], [1], [0, 0, 1, 1], [], []>} : vector<64x32xbf16>, vector<32x256xbf16>, vector<64x256xf32> -> vector<64x256xf32>
    %20 = vector.extract_strided_slice %19 {offsets = [0, 0], sizes = [64, 128], strides = [1, 1]} : vector<64x256xf32> to vector<64x128xf32>
    %21 = arith.addf %14, %20 : vector<64x128xf32>
    %22 = arith.mulf %20, %20 : vector<64x128xf32>
    %23 = arith.addf %16, %22 : vector<64x128xf32>
    %24 = vector.extract_strided_slice %19 {offsets = [0, 128], sizes = [64, 128], strides = [1, 1]} : vector<64x256xf32> to vector<64x128xf32>
    %25 = arith.addf %21, %24 : vector<64x128xf32>
    %26 = arith.mulf %24, %24 : vector<64x128xf32>
    %27 = arith.addf %23, %26 : vector<64x128xf32>
    %c0_10 = arith.constant 0 : index
    %c0_11 = arith.constant 0 : index
    %c0_12 = arith.constant 0 : index
    %28 = vector.load %arg4[%c0_10, %c0_11, %c0_12] : memref<1x64x128xf32, #tpu.memory_space<vmem>>, vector<1x64x128xf32>
    %29 = vector.shape_cast %28 : vector<1x64x128xf32> to vector<64x128xf32>
    %30 = arith.addf %29, %25 : vector<64x128xf32>
    %c0_13 = arith.constant 0 : index
    %c0_14 = arith.constant 0 : index
    %c0_15 = arith.constant 0 : index
    %31 = vector.load %arg4[%c0_13, %c0_14, %c0_15] : memref<1x64x128xf32, #tpu.memory_space<vmem>>, vector<1x64x128xf32>
    %32 = vector.shape_cast %31 : vector<1x64x128xf32> to vector<64x128xf32>
    %33 = vector.shape_cast %30 : vector<64x128xf32> to vector<1x64x128xf32>
    tpu.vector_store %arg4[%c0_13, %c0_14, %c0_15], %33 {strides = array<i32>} : memref<1x64x128xf32, #tpu.memory_space<vmem>>, vector<1x64x128xf32>,
    %c0_16 = arith.constant 0 : index
    %c0_17 = arith.constant 0 : index
    %c0_18 = arith.constant 0 : index
    %34 = vector.load %arg5[%c0_16, %c0_17, %c0_18] : memref<1x64x128xf32, #tpu.memory_space<vmem>>, vector<1x64x128xf32>
    %35 = vector.shape_cast %34 : vector<1x64x128xf32> to vector<64x128xf32>
    %36 = arith.addf %35, %27 : vector<64x128xf32>
    %c0_19 = arith.constant 0 : index
    %c0_20 = arith.constant 0 : index
    %c0_21 = arith.constant 0 : index
    %37 = vector.load %arg5[%c0_19, %c0_20, %c0_21] : memref<1x64x128xf32, #tpu.memory_space<vmem>>, vector<1x64x128xf32>
    %38 = vector.shape_cast %37 : vector<1x64x128xf32> to vector<64x128xf32>
    %39 = vector.shape_cast %36 : vector<64x128xf32> to vector<1x64x128xf32>
    tpu.vector_store %arg5[%c0_19, %c0_20, %c0_21], %39 {strides = array<i32>} : memref<1x64x128xf32, #tpu.memory_space<vmem>>, vector<1x64x128xf32>,
    return
  }
  func.func @transform_0(%arg0: i32, %arg1: i32) -> (i32, i32, i32) {
    %c0_i32 = arith.constant 0 : i32
    %c0_i32_0 = arith.constant 0 : i32
    return %arg0, %c0_i32, %arg1 : i32, i32, i32
  }
  func.func @transform_1(%arg0: i32, %arg1: i32) -> (i32, i32) {
    %c0_i32 = arith.constant 0 : i32
    %c0_i32_0 = arith.constant 0 : i32
    %c0_i32_1 = arith.constant 0 : i32
    return %c0_i32, %c0_i32_0 : i32, i32
  }
  func.func @transform_2(%arg0: i32, %arg1: i32) -> (i32, i32, i32) {
    %c0_i32 = arith.constant 0 : i32
    %c0_i32_0 = arith.constant 0 : i32
    %c0_i32_1 = arith.constant 0 : i32
    return %arg0, %c0_i32, %c0_i32_0 : i32, i32, i32
  }
  func.func @transform_3(%arg0: i32, %arg1: i32) -> (i32, i32, i32) {
    %c0_i32 = arith.constant 0 : i32
    %c0_i32_0 = arith.constant 0 : i32
    %c0_i32_1 = arith.constant 0 : i32
    return %arg0, %c0_i32, %c0_i32_0 : i32, i32, i32
  }
}

module attributes {stable_mosaic.version = 11 : i64} {
  func.func @_normalize_kernel(%arg0: i32, %arg1: i32, %arg2: memref<2x32x256xbf16, #tpu.memory_space<vmem>>, %arg3: memref<64x32xbf16, #tpu.memory_space<vmem>>, %arg4: memref<64x1xf32, #tpu.memory_space<vmem>>, %arg5: memref<64x1xf32, #tpu.memory_space<vmem>>, %arg6: memref<2x64x256xf32, #tpu.memory_space<vmem>>) attributes {dimension_semantics = [#tpu.dimension_semantics<parallel>, #tpu.dimension_semantics<parallel>], iteration_bounds = array<i64: 1, 1>, scalar_prefetch = 0 : i64, scratch_operands = 0 : i64, tpu.core_type = #tpu.core_type<tc>, window_params = [{transform_indices = @transform_0, window_bounds = array<i64: 2, 32, 256>}, {pipeline_mode = #tpu.pipeline_mode<synchronous>, transform_indices = @transform_1, window_bounds = array<i64: 64, 32>}, {pipeline_mode = #tpu.pipeline_mode<synchronous>, transform_indices = @transform_2, window_bounds = array<i64: 64, 1>}, {pipeline_mode = #tpu.pipeline_mode<synchronous>, transform_indices = @transform_3, window_bounds = array<i64: 64, 1>}, {transform_indices = @transform_4, window_bounds = array<i64: 2, 64, 256>}]} {
    %c0 = arith.constant 0 : index
    %c0_0 = arith.constant 0 : index
    %0 = vector.load %arg3[%c0, %c0_0] : memref<64x32xbf16, #tpu.memory_space<vmem>>, vector<64x32xbf16>
    %c0_1 = arith.constant 0 : index
    %c0_2 = arith.constant 0 : index
    %1 = vector.load %arg4[%c0_1, %c0_2] : memref<64x1xf32, #tpu.memory_space<vmem>>, vector<64x1xf32>
    %c0_3 = arith.constant 0 : index
    %c0_4 = arith.constant 0 : index
    %2 = vector.load %arg5[%c0_3, %c0_4] : memref<64x1xf32, #tpu.memory_space<vmem>>, vector<64x1xf32>
    %c0_5 = arith.constant 0 : index
    %c0_6 = arith.constant 0 : index
    %c0_7 = arith.constant 0 : index
    %3 = vector.load %arg2[%c0_5, %c0_6, %c0_7] : memref<2x32x256xbf16, #tpu.memory_space<vmem>>, vector<1x32x256xbf16>
    %4 = vector.shape_cast %3 : vector<1x32x256xbf16> to vector<32x256xbf16>
    %cst = arith.constant dense<0.000000e+00> : vector<64x256xf32>
    %5 = tpu.matmul %0, %4, %cst {dimension_numbers = #tpu.dot_dimension_numbers<[1], [0], [0], [1], [0, 0, 1, 1], [], []>} : vector<64x32xbf16>, vector<32x256xbf16>, vector<64x256xf32> -> vector<64x256xf32>
    %6 = vector.broadcast %1 : vector<64x1xf32> to vector<64x256xf32>
    %7 = arith.mulf %5, %6 : vector<64x256xf32>
    %8 = vector.broadcast %2 : vector<64x1xf32> to vector<64x256xf32>
    %9 = arith.addf %7, %8 : vector<64x256xf32>
    %cst_8 = arith.constant 0.000000e+00 : f32
    %10 = vector.broadcast %cst_8 : f32 to vector<64x256xf32>
    %11 = arith.maximumf %9, %10 : vector<64x256xf32>
    %c0_9 = arith.constant 0 : index
    %c0_10 = arith.constant 0 : index
    %c0_11 = arith.constant 0 : index
    %12 = vector.load %arg6[%c0_9, %c0_10, %c0_11] : memref<2x64x256xf32, #tpu.memory_space<vmem>>, vector<1x64x256xf32>
    %13 = vector.shape_cast %12 : vector<1x64x256xf32> to vector<64x256xf32>
    %14 = vector.shape_cast %11 : vector<64x256xf32> to vector<1x64x256xf32>
    tpu.vector_store %arg6[%c0_9, %c0_10, %c0_11], %14 {strides = array<i32>} : memref<2x64x256xf32, #tpu.memory_space<vmem>>, vector<1x64x256xf32>,
    %c1 = arith.constant 1 : index
    %c0_12 = arith.constant 0 : index
    %c0_13 = arith.constant 0 : index
    %15 = vector.load %arg2[%c1, %c0_12, %c0_13] : memref<2x32x256xbf16, #tpu.memory_space<vmem>>, vector<1x32x256xbf16>
    %16 = vector.shape_cast %15 : vector<1x32x256xbf16> to vector<32x256xbf16>
    %cst_14 = arith.constant dense<0.000000e+00> : vector<64x256xf32>
    %17 = tpu.matmul %0, %16, %cst_14 {dimension_numbers = #tpu.dot_dimension_numbers<[1], [0], [0], [1], [0, 0, 1, 1], [], []>} : vector<64x32xbf16>, vector<32x256xbf16>, vector<64x256xf32> -> vector<64x256xf32>
    %18 = vector.broadcast %1 : vector<64x1xf32> to vector<64x256xf32>
    %19 = arith.mulf %17, %18 : vector<64x256xf32>
    %20 = vector.broadcast %2 : vector<64x1xf32> to vector<64x256xf32>
    %21 = arith.addf %19, %20 : vector<64x256xf32>
    %cst_15 = arith.constant 0.000000e+00 : f32
    %22 = vector.broadcast %cst_15 : f32 to vector<64x256xf32>
    %23 = arith.maximumf %21, %22 : vector<64x256xf32>
    %c1_16 = arith.constant 1 : index
    %c0_17 = arith.constant 0 : index
    %c0_18 = arith.constant 0 : index
    %24 = vector.load %arg6[%c1_16, %c0_17, %c0_18] : memref<2x64x256xf32, #tpu.memory_space<vmem>>, vector<1x64x256xf32>
    %25 = vector.shape_cast %24 : vector<1x64x256xf32> to vector<64x256xf32>
    %26 = vector.shape_cast %23 : vector<64x256xf32> to vector<1x64x256xf32>
    tpu.vector_store %arg6[%c1_16, %c0_17, %c0_18], %26 {strides = array<i32>} : memref<2x64x256xf32, #tpu.memory_space<vmem>>, vector<1x64x256xf32>,
    return
  }
  func.func @transform_0(%arg0: i32, %arg1: i32) -> (i32, i32, i32) {
    %c0_i32 = arith.constant 0 : i32
    %c0_i32_0 = arith.constant 0 : i32
    return %arg0, %c0_i32, %arg1 : i32, i32, i32
  }
  func.func @transform_1(%arg0: i32, %arg1: i32) -> (i32, i32) {
    %c0_i32 = arith.constant 0 : i32
    %c0_i32_0 = arith.constant 0 : i32
    %c0_i32_1 = arith.constant 0 : i32
    return %c0_i32, %c0_i32_0 : i32, i32
  }
  func.func @transform_2(%arg0: i32, %arg1: i32) -> (i32, i32) {
    %c0_i32 = arith.constant 0 : i32
    %c0_i32_0 = arith.constant 0 : i32
    %c0_i32_1 = arith.constant 0 : i32
    return %c0_i32, %c0_i32_0 : i32, i32
  }
  func.func @transform_3(%arg0: i32, %arg1: i32) -> (i32, i32) {
    %c0_i32 = arith.constant 0 : i32
    %c0_i32_0 = arith.constant 0 : i32
    %c0_i32_1 = arith.constant 0 : i32
    return %c0_i32, %c0_i32_0 : i32, i32
  }
  func.func @transform_4(%arg0: i32, %arg1: i32) -> (i32, i32, i32) {
    %c0_i32 = arith.constant 0 : i32
    %c0_i32_0 = arith.constant 0 : i32
    return %arg0, %c0_i32, %arg1 : i32, i32, i32
  }
}

</mosaic_0001>

<llo_original>
// kernel: dense_layer.2
$region0: #{dense_layer.2}
  #allocation0 [shape = 'u32[]', space=smem, size = 0x4, offset = 0x4, fixed_abs, tag = 'smem constant byte address 0x4 - core index']
  #allocation1 [shape = 'u32[144,128]{1,0:T(1,128)}', space=vmem, size = 0x12000, scoped, tag = 'internal scratch']
  %s0 = inlined_call_operand.vmem [shape: bf16[2,32,256], index: 0, kind: input, shape index: {}]
  %s1 = inlined_call_operand.vmem [shape: bf16[64,32], index: 1, kind: input, shape index: {}]
  %s2 = inlined_call_operand.vmem [shape: f32[1,64,128], index: 2, kind: output, shape index: {0}]
  %s3 = inlined_call_operand.vmem [shape: f32[1,64,128], index: 3, kind: output, shape index: {1}]
  %4 = xla_tuple %s2, %s3
  %s5 = sld [smem:[#allocation0]]
  $region30: #{dense_layer.2} parent=0
    _
  %s7 = ssub.s32 1, %s5
  %s8 = scalar_select 0, %s7, %s5
  // Predicated region
  $region2: #{dense_layer.2} parent=0 // pred_check
    _
  $region3: #{dense_layer.2} parent=0 // pred_check_branch
    %10 = sbr.rel (0) target = $region5
  $region4: #{dense_layer.2} parent=0 // pred_region
    _
  $region5: #{dense_layer.2} parent=0 // pred_fallthru
    _
  // Predicated region
  $region6: #{dense_layer.2} parent=0 // pred_check
    _
  $region7: #{dense_layer.2} parent=0 // pred_check_branch
    %12 = sbr.rel (0) target = $region9
  $region8: #{dense_layer.2} parent=0 // pred_region
    _
  $region9: #{dense_layer.2} parent=0 // pred_fallthru
    _
  %p14 = scmp.eq.s32.totalorder 0, 0
  // Predicated region
  $region10: #{dense_layer.2} parent=0 // pred_check
    %p15 = pneg %p14
  $region11: #{dense_layer.2} parent=0 // pred_check_branch
    %17 = sbr.rel (%p15) target = $region13
  $region12: #{dense_layer.2} parent=0 // pred_region
    %18 = vst [vmem:[%s2] sm:$0xff] 0.0
    %19 = vst [vmem:[%s2 + $0x8] sm:$0xff] 0.0
    %20 = vst [vmem:[%s2 + $0x10] sm:$0xff] 0.0
    %21 = vst [vmem:[%s2 + $0x18] sm:$0xff] 0.0
    %22 = vst [vmem:[%s2 + $0x20] sm:$0xff] 0.0
    %23 = vst [vmem:[%s2 + $0x28] sm:$0xff] 0.0
    %24 = vst [vmem:[%s2 + $0x30] sm:$0xff] 0.0
    %25 = vst [vmem:[%s2 + $0x38] sm:$0xff] 0.0
    %26 = vst [vmem:[%s3] sm:$0xff] 0.0
    %27 = vst [vmem:[%s3 + $0x8] sm:$0xff] 0.0
    %28 = vst [vmem:[%s3 + $0x10] sm:$0xff] 0.0
    %29 = vst [vmem:[%s3 + $0x18] sm:$0xff] 0.0
    %30 = vst [vmem:[%s3 + $0x20] sm:$0xff] 0.0
    %31 = vst [vmem:[%s3 + $0x28] sm:$0xff] 0.0
    %32 = vst [vmem:[%s3 + $0x30] sm:$0xff] 0.0
    %33 = vst [vmem:[%s3 + $0x38] sm:$0xff] 0.0
  $region13: #{dense_layer.2} parent=0 // pred_fallthru
    _
  %v34 = vld [vmem:[%s1] sm:$0xf]
  %v35 = vld [vmem:[%s1 + $0x4] sm:$0xf]
  %v36 = vld [vmem:[%s1 + $0x8] sm:$0xf]
  %v37 = vld [vmem:[%s1 + $0xc] sm:$0xf]
  %v38 = vld [vmem:[%s1 + $0x10] sm:$0xf]
  %v39 = vld [vmem:[%s1 + $0x14] sm:$0xf]
  %v40 = vld [vmem:[%s1 + $0x18] sm:$0xf]
  %v41 = vld [vmem:[%s1 + $0x1c] sm:$0xf]
  %v42 = vld [vmem:[%s0] sm:$0xff]
  %v43 = vld [vmem:[%s0 + $0x8] sm:$0xff]
  %v44 = vld [vmem:[%s0 + $0x10] sm:$0xff]
  %v45 = vld [vmem:[%s0 + $0x18] sm:$0xff]
  %v54 = vunpack.c.l.b16 %v34
  %v55 = vunpack.c.l.b16 %v35
  %v56 = vunpack.c.l.b16 %v36
  %v57 = vunpack.c.l.b16 %v37
  %v58 = vunpack.c.l.b16 %v38
  %v59 = vunpack.c.l.b16 %v39
  %v60 = vunpack.c.l.b16 %v40
  %v61 = vunpack.c.l.b16 %v41
  %v62 = vpack.c.b16 %v55, %v54
  %v63 = vpack.c.b16 %v57, %v56
  %v64 = vpack.c.b16 %v59, %v58
  %v65 = vpack.c.b16 %v61, %v60
  %v70 = vunpack.c.l.b16 %v42
  %v71 = vunpack.c.h.b16 %v42
  %v72 = vunpack.c.l.b16 %v43
  %v73 = vunpack.c.h.b16 %v43
  %v74 = vunpack.c.l.b16 %v44
  %v75 = vunpack.c.h.b16 %v44
  %v76 = vunpack.c.l.b16 %v45
  %v77 = vunpack.c.h.b16 %v45
  %v78 = vpack.c.b16 %v72, %v70
  %v79 = vpack.c.b16 %v73, %v71
  %v80 = vpack.c.b16 %v76, %v74
  %v81 = vpack.c.b16 %v77, %v75
  %vm86 = vcmask 261120
  %v88 = vsel %vm86, %v62, 0
  %v91 = vsel %vm86, %v63, 0
  %v94 = vsel %vm86, %v64, 0
  %v97 = vsel %vm86, %v65, 0
  %99 = vmatprep.subr.bf16.mxu0 %v79
  %100 = vmatpush1.bf16.msra.mxu0 %v78
  %101 = vmatprep.subr.bf16.mxu0 %v81
  %102 = vmatpush1.bf16.msra.mxu0 %v80
  %103 = vmatprep.subr.bf16.mxu0 0
  %104 = vmatpush1.bf16.msra.mxu0 0
  %105 = vmatprep.subr.bf16.mxu0 0
  %106 = vmatpush1.bf16.msra.mxu0 0
  %107 = vmatprep.subr.bf16.mxu0 0
  %108 = vmatpush1.bf16.msra.mxu0 0
  %109 = vmatprep.subr.bf16.mxu0 0
  %110 = vmatpush1.bf16.msra.mxu0 0
  %111 = vmatprep.subr.bf16.mxu0 0
  %112 = vmatpush1.bf16.msra.mxu0 0
  %113 = vmatprep.subr.bf16.mxu0 0
  %114 = vmatpush1.bf16.msra.mxu0 0
  %115 = vmatprep.subr.bf16.mxu0 0
  %116 = vmatpush1.bf16.msra.mxu0 0
  %117 = vmatprep.subr.bf16.mxu0 0
  %118 = vmatpush1.bf16.msra.mxu0 0
  %119 = vmatprep.subr.bf16.mxu0 0
  %120 = vmatpush1.bf16.msra.mxu0 0
  %121 = vmatprep.subr.bf16.mxu0 0
  %122 = vmatpush1.bf16.msra.mxu0 0
  %123 = vmatprep.subr.bf16.mxu0 0
  %124 = vmatpush1.bf16.msra.mxu0 0
  %125 = vmatprep.subr.bf16.mxu0 0
  %126 = vmatpush1.bf16.msra.mxu0 0
  %127 = vmatprep.subr.bf16.mxu0 0
  %128 = vmatpush1.bf16.msra.mxu0 0
  %129 = vmatprep.subr.bf16.mxu0 0
  %130 = vmatpush1.bf16.msra.mxu0 0
  %131 = vmatprep.mubr.bf16.mxu0 0
  %132 = vmatmul.mubr.bf16.gmra.mrb[0].mxu0 %v88
  %v133 = vpop.f32.mrb[0].mxu0
  %v134 = vadd.f32 0.0, %v133
  %v135 = vpop.f32.mrb[0].mxu0
  %v136 = vadd.f32 0.0, %v135
  %v137 = vpop.f32.mrb[0].mxu0
  %v138 = vadd.f32 0.0, %v137
  %v139 = vpop.f32.mrb[0].mxu0
  %v140 = vadd.f32 0.0, %v139
  %141 = vmatprep.mubr.bf16.mxu0 0
  %142 = vmatmul.mubr.bf16.gmra.mrb[0].mxu0 %v91
  %v143 = vpop.f32.mrb[0].mxu0
  %v144 = vadd.f32 0.0, %v143
  %v145 = vpop.f32.mrb[0].mxu0
  %v146 = vadd.f32 0.0, %v145
  %v147 = vpop.f32.mrb[0].mxu0
  %v148 = vadd.f32 0.0, %v147
  %v149 = vpop.f32.mrb[0].mxu0
  %v150 = vadd.f32 0.0, %v149
  %151 = vmatprep.mubr.bf16.mxu0 0
  %152 = vmatmul.mubr.bf16.gmra.mrb[0].mxu0 %v94
  %v153 = vpop.f32.mrb[0].mxu0
  %v154 = vadd.f32 0.0, %v153
  %v155 = vpop.f32.mrb[0].mxu0
  %v156 = vadd.f32 0.0, %v155
  %v157 = vpop.f32.mrb[0].mxu0
  %v158 = vadd.f32 0.0, %v157
  %v159 = vpop.f32.mrb[0].mxu0
  %v160 = vadd.f32 0.0, %v159
  %161 = vmatprep.mubr.bf16.mxu0 0
  %162 = vmatmul.mubr.bf16.gmra.mrb[0].mxu0 %v97
  %v163 = vpop.f32.mrb[0].mxu0
  %v164 = vadd.f32 0.0, %v163
  %v165 = vpop.f32.mrb[0].mxu0
  %v166 = vadd.f32 0.0, %v165
  %v167 = vpop.f32.mrb[0].mxu0
  %v168 = vadd.f32 0.0, %v167
  %v169 = vpop.f32.mrb[0].mxu0
  %v170 = vadd.f32 0.0, %v169
  %171 = vdwg.mxu0
  %v172 = vadd.f32 %v134, 0.0
  %v173 = vadd.f32 %v138, 0.0
  %v174 = vadd.f32 %v144, 0.0
  %v175 = vadd.f32 %v148, 0.0
  %v176 = vadd.f32 %v154, 0.0
  %v177 = vadd.f32 %v158, 0.0
  %v178 = vadd.f32 %v164, 0.0
  %v179 = vadd.f32 %v168, 0.0
  %v180 = vmul.f32 %v134, %v134
  %v181 = vmul.f32 %v138, %v138
  %v182 = vmul.f32 %v144, %v144
  %v183 = vmul.f32 %v148, %v148
  %v184 = vmul.f32 %v154, %v154
  %v185 = vmul.f32 %v158, %v158
  %v186 = vmul.f32 %v164, %v164
  %v187 = vmul.f32 %v168, %v168
  %v188 = vadd.f32 %v180, 0.0
  %v189 = vadd.f32 %v181, 0.0
  %v190 = vadd.f32 %v182, 0.0
  %v191 = vadd.f32 %v183, 0.0
  %v192 = vadd.f32 %v184, 0.0
  %v193 = vadd.f32 %v185, 0.0
  %v194 = vadd.f32 %v186, 0.0
  %v195 = vadd.f32 %v187, 0.0
  %v196 = vadd.f32 %v172, %v136
  %v197 = vadd.f32 %v173, %v140
  %v198 = vadd.f32 %v174, %v146
  %v199 = vadd.f32 %v175, %v150
  %v200 = vadd.f32 %v176, %v156
  %v201 = vadd.f32 %v177, %v160
  %v202 = vadd.f32 %v178, %v166
  %v203 = vadd.f32 %v179, %v170
  %v204 = vmul.f32 %v136, %v136
  %v205 = vmul.f32 %v140, %v140
  %v206 = vmul.f32 %v146, %v146
  %v207 = vmul.f32 %v150, %v150
  %v208 = vmul.f32 %v156, %v156
  %v209 = vmul.f32 %v160, %v160
  %v210 = vmul.f32 %v166, %v166
  %v211 = vmul.f32 %v170, %v170
  %v212 = vadd.f32 %v188, %v204
  %v213 = vadd.f32 %v189, %v205
  %v214 = vadd.f32 %v190, %v206
  %v215 = vadd.f32 %v191, %v207
  %v216 = vadd.f32 %v192, %v208
  %v217 = vadd.f32 %v193, %v209
  %v218 = vadd.f32 %v194, %v210
  %v219 = vadd.f32 %v195, %v211
  %s220 = scalar_lea.vmem %s0, 32
  %v221 = vld [vmem:[%s220] sm:$0xff]
  %v222 = vld [vmem:[%s220 + $0x8] sm:$0xff]
  %v223 = vld [vmem:[%s220 + $0x10] sm:$0xff]
  %v224 = vld [vmem:[%s220 + $0x18] sm:$0xff]
  %v229 = vunpack.c.l.b16 %v221
  %v230 = vunpack.c.h.b16 %v221
  %v231 = vunpack.c.l.b16 %v222
  %v232 = vunpack.c.h.b16 %v222
  %v233 = vunpack.c.l.b16 %v223
  %v234 = vunpack.c.h.b16 %v223
  %v235 = vunpack.c.l.b16 %v224
  %v236 = vunpack.c.h.b16 %v224
  %v237 = vpack.c.b16 %v231, %v229
  %v238 = vpack.c.b16 %v232, %v230
  %v239 = vpack.c.b16 %v235, %v233
  %v240 = vpack.c.b16 %v236, %v234
  %245 = vmatprep.subr.bf16.mxu0 %v238
  %246 = vmatpush1.bf16.msra.mxu0 %v237
  %247 = vmatprep.subr.bf16.mxu0 %v240
  %248 = vmatpush1.bf16.msra.mxu0 %v239
  %249 = vmatprep.subr.bf16.mxu0 0
  %250 = vmatpush1.bf16.msra.mxu0 0
  %251 = vmatprep.subr.bf16.mxu0 0
  %252 = vmatpush1.bf16.msra.mxu0 0
  %253 = vmatprep.subr.bf16.mxu0 0
  %254 = vmatpush1.bf16.msra.mxu0 0
  %255 = vmatprep.subr.bf16.mxu0 0
  %256 = vmatpush1.bf16.msra.mxu0 0
  %257 = vmatprep.subr.bf16.mxu0 0
  %258 = vmatpush1.bf16.msra.mxu0 0
  %259 = vmatprep.subr.bf16.mxu0 0
  %260 = vmatpush1.bf16.msra.mxu0 0
  %261 = vmatprep.subr.bf16.mxu0 0
  %262 = vmatpush1.bf16.msra.mxu0 0
  %263 = vmatprep.subr.bf16.mxu0 0
  %264 = vmatpush1.bf16.msra.mxu0 0
  %265 = vmatprep.subr.bf16.mxu0 0
  %266 = vmatpush1.bf16.msra.mxu0 0
  %267 = vmatprep.subr.bf16.mxu0 0
  %268 = vmatpush1.bf16.msra.mxu0 0
  %269 = vmatprep.subr.bf16.mxu0 0
  %270 = vmatpush1.bf16.msra.mxu0 0
  %271 = vmatprep.subr.bf16.mxu0 0
  %272 = vmatpush1.bf16.msra.mxu0 0
  %273 = vmatprep.subr.bf16.mxu0 0
  %274 = vmatpush1.bf16.msra.mxu0 0
  %275 = vmatprep.subr.bf16.mxu0 0
  %276 = vmatpush1.bf16.msra.mxu0 0
  %277 = vmatprep.mubr.bf16.mxu0 0
  %278 = vmatmul.mubr.bf16.gmra.mrb[0].mxu0 %v88
  %v279 = vpop.f32.mrb[0].mxu0
  %v280 = vadd.f32 0.0, %v279
  %v281 = vpop.f32.mrb[0].mxu0
  %v282 = vadd.f32 0.0, %v281
  %v283 = vpop.f32.mrb[0].mxu0
  %v284 = vadd.f32 0.0, %v283
  %v285 = vpop.f32.mrb[0].mxu0
  %v286 = vadd.f32 0.0, %v285
  %287 = vmatprep.mubr.bf16.mxu0 0
  %288 = vmatmul.mubr.bf16.gmra.mrb[0].mxu0 %v91
  %v289 = vpop.f32.mrb[0].mxu0
  %v290 = vadd.f32 0.0, %v289
  %v291 = vpop.f32.mrb[0].mxu0
  %v292 = vadd.f32 0.0, %v291
  %v293 = vpop.f32.mrb[0].mxu0
  %v294 = vadd.f32 0.0, %v293
  %v295 = vpop.f32.mrb[0].mxu0
  %v296 = vadd.f32 0.0, %v295
  %297 = vmatprep.mubr.bf16.mxu0 0
  %298 = vmatmul.mubr.bf16.gmra.mrb[0].mxu0 %v94
  %v299 = vpop.f32.mrb[0].mxu0
  %v300 = vadd.f32 0.0, %v299
  %v301 = vpop.f32.mrb[0].mxu0
  %v302 = vadd.f32 0.0, %v301
  %v303 = vpop.f32.mrb[0].mxu0
  %v304 = vadd.f32 0.0, %v303
  %v305 = vpop.f32.mrb[0].mxu0
  %v306 = vadd.f32 0.0, %v305
  %307 = vmatprep.mubr.bf16.mxu0 0
  %308 = vmatmul.mubr.bf16.gmra.mrb[0].mxu0 %v97
  %v309 = vpop.f32.mrb[0].mxu0
  %v310 = vadd.f32 0.0, %v309
  %v311 = vpop.f32.mrb[0].mxu0
  %v312 = vadd.f32 0.0, %v311
  %v313 = vpop.f32.mrb[0].mxu0
  %v314 = vadd.f32 0.0, %v313
  %v315 = vpop.f32.mrb[0].mxu0
  %v316 = vadd.f32 0.0, %v315
  %317 = vdwg.mxu0
  %v318 = vadd.f32 %v196, %v280
  %v319 = vadd.f32 %v197, %v284
  %v320 = vadd.f32 %v198, %v290
  %v321 = vadd.f32 %v199, %v294
  %v322 = vadd.f32 %v200, %v300
  %v323 = vadd.f32 %v201, %v304
  %v324 = vadd.f32 %v202, %v310
  %v325 = vadd.f32 %v203, %v314
  %v326 = vmul.f32 %v280, %v280
  %v327 = vmul.f32 %v284, %v284
  %v328 = vmul.f32 %v290, %v290
  %v329 = vmul.f32 %v294, %v294
  %v330 = vmul.f32 %v300, %v300
  %v331 = vmul.f32 %v304, %v304
  %v332 = vmul.f32 %v310, %v310
  %v333 = vmul.f32 %v314, %v314
  %v334 = vadd.f32 %v212, %v326
  %v335 = vadd.f32 %v213, %v327
  %v336 = vadd.f32 %v214, %v328
  %v337 = vadd.f32 %v215, %v329
  %v338 = vadd.f32 %v216, %v330
  %v339 = vadd.f32 %v217, %v331
  %v340 = vadd.f32 %v218, %v332
  %v341 = vadd.f32 %v219, %v333
  %v342 = vadd.f32 %v318, %v282
  %v343 = vadd.f32 %v319, %v286
  %v344 = vadd.f32 %v320, %v292
  %v345 = vadd.f32 %v321, %v296
  %v346 = vadd.f32 %v322, %v302
  %v347 = vadd.f32 %v323, %v306
  %v348 = vadd.f32 %v324, %v312
  %v349 = vadd.f32 %v325, %v316
  %v350 = vmul.f32 %v282, %v282
  %v351 = vmul.f32 %v286, %v286
  %v352 = vmul.f32 %v292, %v292
  %v353 = vmul.f32 %v296, %v296
  %v354 = vmul.f32 %v302, %v302
  %v355 = vmul.f32 %v306, %v306
  %v356 = vmul.f32 %v312, %v312
  %v357 = vmul.f32 %v316, %v316
  %v358 = vadd.f32 %v334, %v350
  %v359 = vadd.f32 %v335, %v351
  %v360 = vadd.f32 %v336, %v352
  %v361 = vadd.f32 %v337, %v353
  %v362 = vadd.f32 %v338, %v354
  %v363 = vadd.f32 %v339, %v355
  %v364 = vadd.f32 %v340, %v356
  %v365 = vadd.f32 %v341, %v357
  %v366 = vld [vmem:[%s2] sm:$0xff]
  %v367 = vld [vmem:[%s2 + $0x8] sm:$0xff]
  %v368 = vld [vmem:[%s2 + $0x10] sm:$0xff]
  %v369 = vld [vmem:[%s2 + $0x18] sm:$0xff]
  %v370 = vld [vmem:[%s2 + $0x20] sm:$0xff]
  %v371 = vld [vmem:[%s2 + $0x28] sm:$0xff]
  %v372 = vld [vmem:[%s2 + $0x30] sm:$0xff]
  %v373 = vld [vmem:[%s2 + $0x38] sm:$0xff]
  %v374 = vadd.f32 %v366, %v342
  %v375 = vadd.f32 %v367, %v343
  %v376 = vadd.f32 %v368, %v344
  %v377 = vadd.f32 %v369, %v345
  %v378 = vadd.f32 %v370, %v346
  %v379 = vadd.f32 %v371, %v347
  %v380 = vadd.f32 %v372, %v348
  %v381 = vadd.f32 %v373, %v349
  %382 = vst [vmem:[%s2] sm:$0xff] %v374
  %383 = vst [vmem:[%s2 + $0x8] sm:$0xff] %v375
  %384 = vst [vmem:[%s2 + $0x10] sm:$0xff] %v376
  %385 = vst [vmem:[%s2 + $0x18] sm:$0xff] %v377
  %386 = vst [vmem:[%s2 + $0x20] sm:$0xff] %v378
  %387 = vst [vmem:[%s2 + $0x28] sm:$0xff] %v379
  %388 = vst [vmem:[%s2 + $0x30] sm:$0xff] %v380
  %389 = vst [vmem:[%s2 + $0x38] sm:$0xff] %v381
  %v390 = vld [vmem:[%s3] sm:$0xff]
  %v391 = vld [vmem:[%s3 + $0x8] sm:$0xff]
  %v392 = vld [vmem:[%s3 + $0x10] sm:$0xff]
  %v393 = vld [vmem:[%s3 + $0x18] sm:$0xff]
  %v394 = vld [vmem:[%s3 + $0x20] sm:$0xff]
  %v395 = vld [vmem:[%s3 + $0x28] sm:$0xff]
  %v396 = vld [vmem:[%s3 + $0x30] sm:$0xff]
  %v397 = vld [vmem:[%s3 + $0x38] sm:$0xff]
  %v398 = vadd.f32 %v390, %v358
  %v399 = vadd.f32 %v391, %v359
  %v400 = vadd.f32 %v392, %v360
  %v401 = vadd.f32 %v393, %v361
  %v402 = vadd.f32 %v394, %v362
  %v403 = vadd.f32 %v395, %v363
  %v404 = vadd.f32 %v396, %v364
  %v405 = vadd.f32 %v397, %v365
  %406 = vst [vmem:[%s3] sm:$0xff] %v398
  %407 = vst [vmem:[%s3 + $0x8] sm:$0xff] %v399
  %408 = vst [vmem:[%s3 + $0x10] sm:$0xff] %v400
  %409 = vst [vmem:[%s3 + $0x18] sm:$0xff] %v401
  %410 = vst [vmem:[%s3 + $0x20] sm:$0xff] %v402
  %411 = vst [vmem:[%s3 + $0x28] sm:$0xff] %v403
  %412 = vst [vmem:[%s3 + $0x30] sm:$0xff] %v404
  %413 = vst [vmem:[%s3 + $0x38] sm:$0xff] %v405
  // Predicated region
  $region14: #{dense_layer.2} parent=0 // pred_check
    _
  $region15: #{dense_layer.2} parent=0 // pred_check_branch
    %415 = sbr.rel (0) target = $region17
  $region16: #{dense_layer.2} parent=0 // pred_region
    _
  $region17: #{dense_layer.2} parent=0 // pred_fallthru
    _
  // Predicated region
  $region18: #{dense_layer.2} parent=0 // pred_check
    _
  $region19: #{dense_layer.2} parent=0 // pred_check_branch
    %417 = sbr.rel (0) target = $region21
  $region20: #{dense_layer.2} parent=0 // pred_region
    _
  $region21: #{dense_layer.2} parent=0 // pred_fallthru
    _
  // Predicated region
  $region22: #{dense_layer.2} parent=0 // pred_check
    _
  $region23: #{dense_layer.2} parent=0 // pred_check_branch
    %419 = sbr.rel (0) target = $region25
  $region24: #{dense_layer.2} parent=0 // pred_region
    _
  $region25: #{dense_layer.2} parent=0 // pred_fallthru
    _
  // Predicated region
  $region26: #{dense_layer.2} parent=0 // pred_check
    _
  $region27: #{dense_layer.2} parent=0 // pred_check_branch
    %421 = sbr.rel (0) target = $region29
  $region28: #{dense_layer.2} parent=0 // pred_region
    _
  $region29: #{dense_layer.2} parent=0 // pred_fallthru
    _

// kernel: dense_layer.3
$region0: #{dense_layer.3}
  #allocation0 [shape = 'u32[]', space=smem, size = 0x4, offset = 0x4, fixed_abs, tag = 'smem constant byte address 0x4 - core index']
  #allocation1 [shape = 'u32[144,128]{1,0:T(1,128)}', space=vmem, size = 0x12000, scoped, tag = 'internal scratch']
  %s0 = inlined_call_operand.vmem [shape: bf16[2,32,256], index: 0, kind: input, shape index: {}]
  %s1 = inlined_call_operand.vmem [shape: bf16[64,32], index: 1, kind: input, shape index: {}]
  %s2 = inlined_call_operand.vmem [shape: f32[64,1], index: 2, kind: input, shape index: {}]
  %s3 = inlined_call_operand.vmem [shape: f32[64,1], index: 3, kind: input, shape index: {}]
  %s4 = inlined_call_operand.hbm [shape: f32[2,64,256], index: 4, kind: output, shape index: {}]
  %s5 = sld [smem:[#allocation0]]
  $region26: #{dense_layer.3} parent=0
    _
  %s7 = ssub.s32 1, %s5
  %s8 = scalar_select 0, %s7, %s5
  $region1: #{dense_layer.3} parent=0
    #allocation2 [shape = 'u8[131072]{0}', space=vmem, size = 0x20000, scoped, tag = 'output window, operand 0, single buffered']
    #allocation3 [shape = 's32[1]{0}', space=sflag, size = 0x4, scoped, tag = 'scoped memory for dense_layer.3']
    %9 = vsyncpa [#allocation3], 0
    // Predicated region
    $region2: #{dense_layer.3} parent=1 // pred_check
      _
    $region3: #{dense_layer.3} parent=1 // pred_check_branch
      %11 = sbr.rel (0) target = $region5
    $region4: #{dense_layer.3} parent=1 // pred_region
      _
    $region5: #{dense_layer.3} parent=1 // pred_fallthru
      _
    // Predicated region
    $region6: #{dense_layer.3} parent=1 // pred_check
      _
    $region7: #{dense_layer.3} parent=1 // pred_check_branch
      %13 = sbr.rel (0) target = $region9
    $region8: #{dense_layer.3} parent=1 // pred_region
      _
    $region9: #{dense_layer.3} parent=1 // pred_fallthru
      _
    // Predicated region
    $region10: #{dense_layer.3} parent=1 // pred_check
      _
    $region11: #{dense_layer.3} parent=1 // pred_check_branch
      %15 = sbr.rel (0) target = $region13
    $region12: #{dense_layer.3} parent=1 // pred_region
      _
    $region13: #{dense_layer.3} parent=1 // pred_fallthru
      _
    // Predicated region
    $region14: #{dense_layer.3} parent=1 // pred_check
      _
    $region15: #{dense_layer.3} parent=1 // pred_check_branch
      %17 = sbr.rel (0) target = $region17
    $region16: #{dense_layer.3} parent=1 // pred_region
      _
    $region17: #{dense_layer.3} parent=1 // pred_fallthru
      _
    %v19 = vld [vmem:[%s1] sm:$0xf]
    %v20 = vld [vmem:[%s1 + $0x4] sm:$0xf]
    %v21 = vld [vmem:[%s1 + $0x8] sm:$0xf]
    %v22 = vld [vmem:[%s1 + $0xc] sm:$0xf]
    %v23 = vld [vmem:[%s1 + $0x10] sm:$0xf]
    %v24 = vld [vmem:[%s1 + $0x14] sm:$0xf]
    %v25 = vld [vmem:[%s1 + $0x18] sm:$0xf]
    %v26 = vld [vmem:[%s1 + $0x1c] sm:$0xf]
    %v27 = vld [vmem:[%s2] sm:$0xff]
    %v28 = vld [vmem:[%s2 + $0x8] sm:$0xff]
    %v29 = vld [vmem:[%s2 + $0x10] sm:$0xff]
    %v30 = vld [vmem:[%s2 + $0x18] sm:$0xff]
    %v31 = vld [vmem:[%s2 + $0x20] sm:$0xff]
    %v32 = vld [vmem:[%s2 + $0x28] sm:$0xff]
    %v33 = vld [vmem:[%s2 + $0x30] sm:$0xff]
    %v34 = vld [vmem:[%s2 + $0x38] sm:$0xff]
    %v35 = vld [vmem:[%s3] sm:$0xff]
    %v36 = vld [vmem:[%s3 + $0x8] sm:$0xff]
    %v37 = vld [vmem:[%s3 + $0x10] sm:$0xff]
    %v38 = vld [vmem:[%s3 + $0x18] sm:$0xff]
    %v39 = vld [vmem:[%s3 + $0x20] sm:$0xff]
    %v40 = vld [vmem:[%s3 + $0x28] sm:$0xff]
    %v41 = vld [vmem:[%s3 + $0x30] sm:$0xff]
    %v42 = vld [vmem:[%s3 + $0x38] sm:$0xff]
    %v43 = vld [vmem:[%s0] sm:$0xff]
    %v44 = vld [vmem:[%s0 + $0x8] sm:$0xff]
    %v45 = vld [vmem:[%s0 + $0x10] sm:$0xff]
    %v46 = vld [vmem:[%s0 + $0x18] sm:$0xff]
    %v55 = vunpack.c.l.b16 %v19
    %v56 = vunpack.c.l.b16 %v20
    %v57 = vunpack.c.l.b16 %v21
    %v58 = vunpack.c.l.b16 %v22
    %v59 = vunpack.c.l.b16 %v23
    %v60 = vunpack.c.l.b16 %v24
    %v61 = vunpack.c.l.b16 %v25
    %v62 = vunpack.c.l.b16 %v26
    %v63 = vpack.c.b16 %v56, %v55
    %v64 = vpack.c.b16 %v58, %v57
    %v65 = vpack.c.b16 %v60, %v59
    %v66 = vpack.c.b16 %v62, %v61
    %v71 = vunpack.c.l.b16 %v43
    %v72 = vunpack.c.h.b16 %v43
    %v73 = vunpack.c.l.b16 %v44
    %v74 = vunpack.c.h.b16 %v44
    %v75 = vunpack.c.l.b16 %v45
    %v76 = vunpack.c.h.b16 %v45
    %v77 = vunpack.c.l.b16 %v46
    %v78 = vunpack.c.h.b16 %v46
    %v79 = vpack.c.b16 %v73, %v71
    %v80 = vpack.c.b16 %v74, %v72
    %v81 = vpack.c.b16 %v77, %v75
    %v82 = vpack.c.b16 %v78, %v76
    %vm87 = vcmask 261120
    %v89 = vsel %vm87, %v63, 0
    %v92 = vsel %vm87, %v64, 0
    %v95 = vsel %vm87, %v65, 0
    %v98 = vsel %vm87, %v66, 0
    %100 = vmatprep.subr.bf16.mxu0 %v80
    %101 = vmatpush1.bf16.msra.mxu0 %v79
    %102 = vmatprep.subr.bf16.mxu0 %v82
    %103 = vmatpush1.bf16.msra.mxu0 %v81
    %104 = vmatprep.subr.bf16.mxu0 0
    %105 = vmatpush1.bf16.msra.mxu0 0
    %106 = vmatprep.subr.bf16.mxu0 0
    %107 = vmatpush1.bf16.msra.mxu0 0
    %108 = vmatprep.subr.bf16.mxu0 0
    %109 = vmatpush1.bf16.msra.mxu0 0
    %110 = vmatprep.subr.bf16.mxu0 0
    %111 = vmatpush1.bf16.msra.mxu0 0
    %112 = vmatprep.subr.bf16.mxu0 0
    %113 = vmatpush1.bf16.msra.mxu0 0
    %114 = vmatprep.subr.bf16.mxu0 0
    %115 = vmatpush1.bf16.msra.mxu0 0
    %116 = vmatprep.subr.bf16.mxu0 0
    %117 = vmatpush1.bf16.msra.mxu0 0
    %118 = vmatprep.subr.bf16.mxu0 0
    %119 = vmatpush1.bf16.msra.mxu0 0
    %120 = vmatprep.subr.bf16.mxu0 0
    %121 = vmatpush1.bf16.msra.mxu0 0
    %122 = vmatprep.subr.bf16.mxu0 0
    %123 = vmatpush1.bf16.msra.mxu0 0
    %124 = vmatprep.subr.bf16.mxu0 0
    %125 = vmatpush1.bf16.msra.mxu0 0
    %126 = vmatprep.subr.bf16.mxu0 0
    %127 = vmatpush1.bf16.msra.mxu0 0
    %128 = vmatprep.subr.bf16.mxu0 0
    %129 = vmatpush1.bf16.msra.mxu0 0
    %130 = vmatprep.subr.bf16.mxu0 0
    %131 = vmatpush1.bf16.msra.mxu0 0
    %132 = vmatprep.mubr.bf16.mxu0 0
    %133 = vmatmul.mubr.bf16.gmra.mrb[0].mxu0 %v89
    %v134 = vpop.f32.mrb[0].mxu0
    %v135 = vadd.f32 0.0, %v134
    %v136 = vpop.f32.mrb[0].mxu0
    %v137 = vadd.f32 0.0, %v136
    %v138 = vpop.f32.mrb[0].mxu0
    %v139 = vadd.f32 0.0, %v138
    %v140 = vpop.f32.mrb[0].mxu0
    %v141 = vadd.f32 0.0, %v140
    %142 = vmatprep.mubr.bf16.mxu0 0
    %143 = vmatmul.mubr.bf16.gmra.mrb[0].mxu0 %v92
    %v144 = vpop.f32.mrb[0].mxu0
    %v145 = vadd.f32 0.0, %v144
    %v146 = vpop.f32.mrb[0].mxu0
    %v147 = vadd.f32 0.0, %v146
    %v148 = vpop.f32.mrb[0].mxu0
    %v149 = vadd.f32 0.0, %v148
    %v150 = vpop.f32.mrb[0].mxu0
    %v151 = vadd.f32 0.0, %v150
    %152 = vmatprep.mubr.bf16.mxu0 0
    %153 = vmatmul.mubr.bf16.gmra.mrb[0].mxu0 %v95
    %v154 = vpop.f32.mrb[0].mxu0
    %v155 = vadd.f32 0.0, %v154
    %v156 = vpop.f32.mrb[0].mxu0
    %v157 = vadd.f32 0.0, %v156
    %v158 = vpop.f32.mrb[0].mxu0
    %v159 = vadd.f32 0.0, %v158
    %v160 = vpop.f32.mrb[0].mxu0
    %v161 = vadd.f32 0.0, %v160
    %162 = vmatprep.mubr.bf16.mxu0 0
    %163 = vmatmul.mubr.bf16.gmra.mrb[0].mxu0 %v98
    %v164 = vpop.f32.mrb[0].mxu0
    %v165 = vadd.f32 0.0, %v164
    %v166 = vpop.f32.mrb[0].mxu0
    %v167 = vadd.f32 0.0, %v166
    %v168 = vpop.f32.mrb[0].mxu0
    %v169 = vadd.f32 0.0, %v168
    %v170 = vpop.f32.mrb[0].mxu0
    %v171 = vadd.f32 0.0, %v170
    %172 = vdwg.mxu0
    %174 = vset.pattern.permute.xlu0 0
    %175 = vperm.xlu0 %174, %v27
    %v176 = vpop.permute.xlu0 %175
    %179 = vset.pattern.permute.xlu0 0
    %180 = vperm.xlu0 %179, %v28
    %v181 = vpop.permute.xlu0 %180
    %184 = vset.pattern.permute.xlu0 0
    %185 = vperm.xlu0 %184, %v29
    %v186 = vpop.permute.xlu0 %185
    %189 = vset.pattern.permute.xlu0 0
    %190 = vperm.xlu0 %189, %v30
    %v191 = vpop.permute.xlu0 %190
    %194 = vset.pattern.permute.xlu0 0
    %195 = vperm.xlu0 %194, %v31
    %v196 = vpop.permute.xlu0 %195
    %199 = vset.pattern.permute.xlu0 0
    %200 = vperm.xlu0 %199, %v32
    %v201 = vpop.permute.xlu0 %200
    %204 = vset.pattern.permute.xlu0 0
    %205 = vperm.xlu0 %204, %v33
    %v206 = vpop.permute.xlu0 %205
    %209 = vset.pattern.permute.xlu0 0
    %210 = vperm.xlu0 %209, %v34
    %v211 = vpop.permute.xlu0 %210
    %v213 = vmul.f32 %v135, %v176
    %v214 = vmul.f32 %v137, %v176
    %v215 = vmul.f32 %v139, %v181
    %v216 = vmul.f32 %v141, %v181
    %v217 = vmul.f32 %v145, %v186
    %v218 = vmul.f32 %v147, %v186
    %v219 = vmul.f32 %v149, %v191
    %v220 = vmul.f32 %v151, %v191
    %v221 = vmul.f32 %v155, %v196
    %v222 = vmul.f32 %v157, %v196
    %v223 = vmul.f32 %v159, %v201
    %v224 = vmul.f32 %v161, %v201
    %v225 = vmul.f32 %v165, %v206
    %v226 = vmul.f32 %v167, %v206
    %v227 = vmul.f32 %v169, %v211
    %v228 = vmul.f32 %v171, %v211
    %230 = vset.pattern.permute.xlu0 0
    %231 = vperm.xlu0 %230, %v35
    %v232 = vpop.permute.xlu0 %231
    %235 = vset.pattern.permute.xlu0 0
    %236 = vperm.xlu0 %235, %v36
    %v237 = vpop.permute.xlu0 %236
    %240 = vset.pattern.permute.xlu0 0
    %241 = vperm.xlu0 %240, %v37
    %v242 = vpop.permute.xlu0 %241
    %245 = vset.pattern.permute.xlu0 0
    %246 = vperm.xlu0 %245, %v38
    %v247 = vpop.permute.xlu0 %246
    %250 = vset.pattern.permute.xlu0 0
    %251 = vperm.xlu0 %250, %v39
    %v252 = vpop.permute.xlu0 %251
    %255 = vset.pattern.permute.xlu0 0
    %256 = vperm.xlu0 %255, %v40
    %v257 = vpop.permute.xlu0 %256
    %260 = vset.pattern.permute.xlu0 0
    %261 = vperm.xlu0 %260, %v41
    %v262 = vpop.permute.xlu0 %261
    %265 = vset.pattern.permute.xlu0 0
    %266 = vperm.xlu0 %265, %v42
    %v267 = vpop.permute.xlu0 %266
    %v269 = vadd.f32 %v213, %v232
    %v270 = vadd.f32 %v214, %v232
    %v271 = vadd.f32 %v215, %v237
    %v272 = vadd.f32 %v216, %v237
    %v273 = vadd.f32 %v217, %v242
    %v274 = vadd.f32 %v218, %v242
    %v275 = vadd.f32 %v219, %v247
    %v276 = vadd.f32 %v220, %v247
    %v277 = vadd.f32 %v221, %v252
    %v278 = vadd.f32 %v222, %v252
    %v279 = vadd.f32 %v223, %v257
    %v280 = vadd.f32 %v224, %v257
    %v281 = vadd.f32 %v225, %v262
    %v282 = vadd.f32 %v226, %v262
    %v283 = vadd.f32 %v227, %v267
    %v284 = vadd.f32 %v228, %v267
    %v285 = vmax.f32 %v269, 0.0
    %v286 = vmax.f32 %v270, 0.0
    %v287 = vmax.f32 %v271, 0.0
    %v288 = vmax.f32 %v272, 0.0
    %v289 = vmax.f32 %v273, 0.0
    %v290 = vmax.f32 %v274, 0.0
    %v291 = vmax.f32 %v275, 0.0
    %v292 = vmax.f32 %v276, 0.0
    %v293 = vmax.f32 %v277, 0.0
    %v294 = vmax.f32 %v278, 0.0
    %v295 = vmax.f32 %v279, 0.0
    %v296 = vmax.f32 %v280, 0.0
    %v297 = vmax.f32 %v281, 0.0
    %v298 = vmax.f32 %v282, 0.0
    %v299 = vmax.f32 %v283, 0.0
    %v300 = vmax.f32 %v284, 0.0
    %301 = vst [vmem:[#allocation2] sm:$0xff] %v285
    %302 = vst [vmem:[#allocation2 + $0x8] sm:$0xff] %v286
    %303 = vst [vmem:[#allocation2 + $0x10] sm:$0xff] %v287
    %304 = vst [vmem:[#allocation2 + $0x18] sm:$0xff] %v288
    %305 = vst [vmem:[#allocation2 + $0x20] sm:$0xff] %v289
    %306 = vst [vmem:[#allocation2 + $0x28] sm:$0xff] %v290
    %307 = vst [vmem:[#allocation2 + $0x30] sm:$0xff] %v291
    %308 = vst [vmem:[#allocation2 + $0x38] sm:$0xff] %v292
    %309 = vst [vmem:[#allocation2 + $0x40] sm:$0xff] %v293
    %310 = vst [vmem:[#allocation2 + $0x48] sm:$0xff] %v294
    %311 = vst [vmem:[#allocation2 + $0x50] sm:$0xff] %v295
    %312 = vst [vmem:[#allocation2 + $0x58] sm:$0xff] %v296
    %313 = vst [vmem:[#allocation2 + $0x60] sm:$0xff] %v297
    %314 = vst [vmem:[#allocation2 + $0x68] sm:$0xff] %v298
    %315 = vst [vmem:[#allocation2 + $0x70] sm:$0xff] %v299
    %316 = vst [vmem:[#allocation2 + $0x78] sm:$0xff] %v300
    %s317 = scalar_lea.vmem %s0, 32
    %v318 = vld [vmem:[%s317] sm:$0xff]
    %v319 = vld [vmem:[%s317 + $0x8] sm:$0xff]
    %v320 = vld [vmem:[%s317 + $0x10] sm:$0xff]
    %v321 = vld [vmem:[%s317 + $0x18] sm:$0xff]
    %v326 = vunpack.c.l.b16 %v318
    %v327 = vunpack.c.h.b16 %v318
    %v328 = vunpack.c.l.b16 %v319
    %v329 = vunpack.c.h.b16 %v319
    %v330 = vunpack.c.l.b16 %v320
    %v331 = vunpack.c.h.b16 %v320
    %v332 = vunpack.c.l.b16 %v321
    %v333 = vunpack.c.h.b16 %v321
    %v334 = vpack.c.b16 %v328, %v326
    %v335 = vpack.c.b16 %v329, %v327
    %v336 = vpack.c.b16 %v332, %v330
    %v337 = vpack.c.b16 %v333, %v331
    %342 = vmatprep.subr.bf16.mxu0 %v335
    %343 = vmatpush1.bf16.msra.mxu0 %v334
    %344 = vmatprep.subr.bf16.mxu0 %v337
    %345 = vmatpush1.bf16.msra.mxu0 %v336
    %346 = vmatprep.subr.bf16.mxu0 0
    %347 = vmatpush1.bf16.msra.mxu0 0
    %348 = vmatprep.subr.bf16.mxu0 0
    %349 = vmatpush1.bf16.msra.mxu0 0
    %350 = vmatprep.subr.bf16.mxu0 0
    %351 = vmatpush1.bf16.msra.mxu0 0
    %352 = vmatprep.subr.bf16.mxu0 0
    %353 = vmatpush1.bf16.msra.mxu0 0
    %354 = vmatprep.subr.bf16.mxu0 0
    %355 = vmatpush1.bf16.msra.mxu0 0
    %356 = vmatprep.subr.bf16.mxu0 0
    %357 = vmatpush1.bf16.msra.mxu0 0
    %358 = vmatprep.subr.bf16.mxu0 0
    %359 = vmatpush1.bf16.msra.mxu0 0
    %360 = vmatprep.subr.bf16.mxu0 0
    %361 = vmatpush1.bf16.msra.mxu0 0
    %362 = vmatprep.subr.bf16.mxu0 0
    %363 = vmatpush1.bf16.msra.mxu0 0
    %364 = vmatprep.subr.bf16.mxu0 0
    %365 = vmatpush1.bf16.msra.mxu0 0
    %366 = vmatprep.subr.bf16.mxu0 0
    %367 = vmatpush1.bf16.msra.mxu0 0
    %368 = vmatprep.subr.bf16.mxu0 0
    %369 = vmatpush1.bf16.msra.mxu0 0
    %370 = vmatprep.subr.bf16.mxu0 0
    %371 = vmatpush1.bf16.msra.mxu0 0
    %372 = vmatprep.subr.bf16.mxu0 0
    %373 = vmatpush1.bf16.msra.mxu0 0
    %374 = vmatprep.mubr.bf16.mxu0 0
    %375 = vmatmul.mubr.bf16.gmra.mrb[0].mxu0 %v89
    %v376 = vpop.f32.mrb[0].mxu0
    %v377 = vadd.f32 0.0, %v376
    %v378 = vpop.f32.mrb[0].mxu0
    %v379 = vadd.f32 0.0, %v378
    %v380 = vpop.f32.mrb[0].mxu0
    %v381 = vadd.f32 0.0, %v380
    %v382 = vpop.f32.mrb[0].mxu0
    %v383 = vadd.f32 0.0, %v382
    %384 = vmatprep.mubr.bf16.mxu0 0
    %385 = vmatmul.mubr.bf16.gmra.mrb[0].mxu0 %v92
    %v386 = vpop.f32.mrb[0].mxu0
    %v387 = vadd.f32 0.0, %v386
    %v388 = vpop.f32.mrb[0].mxu0
    %v389 = vadd.f32 0.0, %v388
    %v390 = vpop.f32.mrb[0].mxu0
    %v391 = vadd.f32 0.0, %v390
    %v392 = vpop.f32.mrb[0].mxu0
    %v393 = vadd.f32 0.0, %v392
    %394 = vmatprep.mubr.bf16.mxu0 0
    %395 = vmatmul.mubr.bf16.gmra.mrb[0].mxu0 %v95
    %v396 = vpop.f32.mrb[0].mxu0
    %v397 = vadd.f32 0.0, %v396
    %v398 = vpop.f32.mrb[0].mxu0
    %v399 = vadd.f32 0.0, %v398
    %v400 = vpop.f32.mrb[0].mxu0
    %v401 = vadd.f32 0.0, %v400
    %v402 = vpop.f32.mrb[0].mxu0
    %v403 = vadd.f32 0.0, %v402
    %404 = vmatprep.mubr.bf16.mxu0 0
    %405 = vmatmul.mubr.bf16.gmra.mrb[0].mxu0 %v98
    %v406 = vpop.f32.mrb[0].mxu0
    %v407 = vadd.f32 0.0, %v406
    %v408 = vpop.f32.mrb[0].mxu0
    %v409 = vadd.f32 0.0, %v408
    %v410 = vpop.f32.mrb[0].mxu0
    %v411 = vadd.f32 0.0, %v410
    %v412 = vpop.f32.mrb[0].mxu0
    %v413 = vadd.f32 0.0, %v412
    %414 = vdwg.mxu0
    %v415 = vmul.f32 %v377, %v176
    %v416 = vmul.f32 %v379, %v176
    %v417 = vmul.f32 %v381, %v181
    %v418 = vmul.f32 %v383, %v181
    %v419 = vmul.f32 %v387, %v186
    %v420 = vmul.f32 %v389, %v186
    %v421 = vmul.f32 %v391, %v191
    %v422 = vmul.f32 %v393, %v191
    %v423 = vmul.f32 %v397, %v196
    %v424 = vmul.f32 %v399, %v196
    %v425 = vmul.f32 %v401, %v201
    %v426 = vmul.f32 %v403, %v201
    %v427 = vmul.f32 %v407, %v206
    %v428 = vmul.f32 %v409, %v206
    %v429 = vmul.f32 %v411, %v211
    %v430 = vmul.f32 %v413, %v211
    %v431 = vadd.f32 %v415, %v232
    %v432 = vadd.f32 %v416, %v232
    %v433 = vadd.f32 %v417, %v237
    %v434 = vadd.f32 %v418, %v237
    %v435 = vadd.f32 %v419, %v242
    %v436 = vadd.f32 %v420, %v242
    %v437 = vadd.f32 %v421, %v247
    %v438 = vadd.f32 %v422, %v247
    %v439 = vadd.f32 %v423, %v252
    %v440 = vadd.f32 %v424, %v252
    %v441 = vadd.f32 %v425, %v257
    %v442 = vadd.f32 %v426, %v257
    %v443 = vadd.f32 %v427, %v262
    %v444 = vadd.f32 %v428, %v262
    %v445 = vadd.f32 %v429, %v267
    %v446 = vadd.f32 %v430, %v267
    %v447 = vmax.f32 %v431, 0.0
    %v448 = vmax.f32 %v432, 0.0
    %v449 = vmax.f32 %v433, 0.0
    %v450 = vmax.f32 %v434, 0.0
    %v451 = vmax.f32 %v435, 0.0
    %v452 = vmax.f32 %v436, 0.0
    %v453 = vmax.f32 %v437, 0.0
    %v454 = vmax.f32 %v438, 0.0
    %v455 = vmax.f32 %v439, 0.0
    %v456 = vmax.f32 %v440, 0.0
    %v457 = vmax.f32 %v441, 0.0
    %v458 = vmax.f32 %v442, 0.0
    %v459 = vmax.f32 %v443, 0.0
    %v460 = vmax.f32 %v444, 0.0
    %v461 = vmax.f32 %v445, 0.0
    %v462 = vmax.f32 %v446, 0.0
    %s463 = scalar_lea.vmem [#allocation2], 128
    %464 = vst [vmem:[%s463] sm:$0xff] %v447
    %465 = vst [vmem:[%s463 + $0x8] sm:$0xff] %v448
    %466 = vst [vmem:[%s463 + $0x10] sm:$0xff] %v449
    %467 = vst [vmem:[%s463 + $0x18] sm:$0xff] %v450
    %468 = vst [vmem:[%s463 + $0x20] sm:$0xff] %v451
    %469 = vst [vmem:[%s463 + $0x28] sm:$0xff] %v452
    %470 = vst [vmem:[%s463 + $0x30] sm:$0xff] %v453
    %471 = vst [vmem:[%s463 + $0x38] sm:$0xff] %v454
    %472 = vst [vmem:[%s463 + $0x40] sm:$0xff] %v455
    %473 = vst [vmem:[%s463 + $0x48] sm:$0xff] %v456
    %474 = vst [vmem:[%s463 + $0x50] sm:$0xff] %v457
    %475 = vst [vmem:[%s463 + $0x58] sm:$0xff] %v458
    %476 = vst [vmem:[%s463 + $0x60] sm:$0xff] %v459
    %477 = vst [vmem:[%s463 + $0x68] sm:$0xff] %v460
    %478 = vst [vmem:[%s463 + $0x70] sm:$0xff] %v461
    %479 = vst [vmem:[%s463 + $0x78] sm:$0xff] %v462
    // Predicated region
    $region18: #{dense_layer.3} parent=1 // pred_check
      _
    $region19: #{dense_layer.3} parent=1 // pred_check_branch
      %481 = sbr.rel (0) target = $region21
    $region20: #{dense_layer.3} parent=1 // pred_region
      %s483 = ssub.s32 4096, 4096
      %484 = vsyncadd [#allocation3], %s483
      %s485 = sshll.u32 [#allocation2], 4
      %s486 = int_to_ptr.vmem [resolvable:$true] %s485
      %491 = dma.vmem_to_hbm [thread:$0]  %s486, 4096, %s4, [#allocation3], 256, 256, 16
    $region21: #{dense_layer.3} parent=1 // pred_fallthru
      _
    // Predicated region
    $region22: #{dense_layer.3} parent=1 // pred_check
      _
    $region23: #{dense_layer.3} parent=1 // pred_check_branch
      %493 = sbr.rel (0) target = $region25
    $region24: #{dense_layer.3} parent=1 // pred_region
      %494 = dma.done [#allocation3], 4096
    $region25: #{dense_layer.3} parent=1 // pred_fallthru
      _
    %495 = vsyncpa [#allocation3], 1

</llo_original>
